<compile_context>
chip_gen: v7x
topology: tpu7x:2x2x1
jax: 0.10.0
libtpu: 0.0.40
codegen_flags: <defaults>
</compile_context>

<pallas_src>
import jax
import jax.numpy as jnp
from jax.experimental import pallas as pl
from jax.experimental.pallas import tpu as pltpu

NUM_CLASSES = 10
PAD_CLASSES = 128   # fc3 compute width (lane-dense MXU / single-vreg row reductions)
H1 = 256
H2 = 128


def _round_up(x, m):
    return (x + m - 1) // m * m


def classifier_kernel(z_ref, w1_ref, b1_ref, w2_ref, b2_ref, w3_ref, b3_ref, out_ref):
    # cast to bf16 in VMEM (MXU path), accumulate in f32
    z = z_ref[...].astype(jnp.bfloat16)
    # fc1 + ReLU
    h1 = jnp.dot(z, w1_ref[...], preferred_element_type=jnp.float32) + b1_ref[...]
    h1 = jnp.maximum(h1, 0.0)
    # fc2 + ReLU
    h2 = jnp.dot(h1.astype(jnp.bfloat16), w2_ref[...],
                 preferred_element_type=jnp.float32) + b2_ref[...]
    h2 = jnp.maximum(h2, 0.0)
    # fc3 (padded to 128 lanes); padded columns carry zero weights and a -1e30 bias,
    # so they never win the row max and exp() underflows to 0 in the softmax sum.
    logits = jnp.dot(h2.astype(jnp.bfloat16), w3_ref[...],
                     preferred_element_type=jnp.float32) + b3_ref[...]
    # numerically stable log_softmax over the class axis (one 128-lane vreg row)
    m = jnp.max(logits, axis=-1, keepdims=True)
    shifted = logits - m
    lse = jnp.log(jnp.sum(jnp.exp(shifted), axis=-1, keepdims=True))
    # store only the real classes (block last dim == full output last dim)
    out_ref[...] = (shifted - lse)[:, :NUM_CLASSES]


def _select_tiling(B, max_tile_b):
    """Pick (tile_b, B_pad, n_tiles): batch padded to a multiple of 8 only, >=2 grid
    steps whenever possible (v7x megacore), last tile never mostly padding."""
    B8 = _round_up(B, 8)
    n_tiles = pl.cdiv(B8, max_tile_b)
    if B8 >= 16:
        n_tiles = max(n_tiles, 2)
    tile_b = _round_up(pl.cdiv(B8, n_tiles), 8)
    n_tiles = pl.cdiv(B8, tile_b)
    B_pad = tile_b * n_tiles
    return tile_b, B_pad, n_tiles


def classifier_forward(z, params, max_tile_b=512):
    """z: (B, latent_dim) float32.  Returns (B, NUM_CLASSES) float32 log-probs."""
    B, D = z.shape
    w1, b1 = params["w1"], params["b1"]
    w2, b2 = params["w2"], params["b2"]
    w3, b3 = params["w3"], params["b3"]

    tile_b, B_pad, n_tiles = _select_tiling(B, max_tile_b)
    if B_pad != B:
        z = jnp.pad(z, ((0, B_pad - B), (0, 0)))

    def resident(shape):
        # Whole array, same block every grid step -> DMA'd once, stays resident in VMEM.
        return pl.BlockSpec(shape, lambda i: (0, 0))

    flops = 2 * B_pad * (D * H1 + H1 * H2 + H2 * PAD_CLASSES)
    bytes_accessed = (B_pad * D * 4                                  # z in (f32)
                      + (w1.size + w2.size + w3.size) * 2            # bf16 weights
                      + (b1.size + b2.size + b3.size) * 4            # f32 biases
                      + B_pad * NUM_CLASSES * 4)                     # narrow f32 out

    out = pl.pallas_call(
        classifier_kernel,
        out_shape=jax.ShapeDtypeStruct((B_pad, NUM_CLASSES), jnp.float32),
        grid=(n_tiles,),
        in_specs=[
            pl.BlockSpec((tile_b, D), lambda i: (i, 0)),             # z tile (f32)
            resident((D, H1)), resident((1, H1)),                    # fc1 (bf16 W, f32 b)
            resident((H1, H2)), resident((1, H2)),                   # fc2
            resident((H2, PAD_CLASSES)), resident((1, PAD_CLASSES)), # fc3 (padded)
        ],
        out_specs=pl.BlockSpec((tile_b, NUM_CLASSES), lambda i: (i, 0)),
        compiler_params=pltpu.CompilerParams(
            dimension_semantics=("parallel",)),
        cost_estimate=pl.CostEstimate(
            flops=flops,
            transcendentals=B_pad * (PAD_CLASSES + 1),
            bytes_accessed=bytes_accessed),
    )(z, w1, b1, w2, b2, w3, b3)

    return out[:B] if B_pad != B else out


def init_params(key, latent_dim=128):
    """PyTorch-style init: U(-1/sqrt(fan_in), 1/sqrt(fan_in)).
    Weights stored transposed (in, out) in bf16; fc3 zero-padded to 128 output columns
    with the class mask baked into the padded bias entries (-1e30). Biases stay f32."""
    dims = [(latent_dim, H1), (H1, H2), (H2, NUM_CLASSES)]
    params = {}
    keys = jax.random.split(key, 2 * len(dims))
    for i, (fan_in, fan_out) in enumerate(dims):
        bound = 1.0 / jnp.sqrt(fan_in)
        w = jax.random.uniform(keys[2 * i], (fan_in, fan_out),
                               minval=-bound, maxval=bound, dtype=jnp.float32)
        b = jax.random.uniform(keys[2 * i + 1], (1, fan_out),
                               minval=-bound, maxval=bound, dtype=jnp.float32)
        if i == len(dims) - 1 and fan_out < PAD_CLASSES:
            w = jnp.pad(w, ((0, 0), (0, PAD_CLASSES - fan_out)))  # zero weights
            b = jnp.pad(b, ((0, 0), (0, PAD_CLASSES - fan_out)),
                        constant_values=-1e30)                    # mask in the bias
        params[f"w{i + 1}"] = w.astype(jnp.bfloat16)
        params[f"b{i + 1}"] = b  # bias add in f32
    return params


def _reference(z, params):
    """Pure-JAX reference of the same (bf16 matmul, f32 accumulate) math."""
    h1 = jnp.maximum(
        jnp.dot(z.astype(jnp.bfloat16), params["w1"],
                preferred_element_type=jnp.float32) + params["b1"], 0.0)
    h2 = jnp.maximum(
        jnp.dot(h1.astype(jnp.bfloat16), params["w2"],
                preferred_element_type=jnp.float32) + params["b2"], 0.0)
    logits = (jnp.dot(h2.astype(jnp.bfloat16), params["w3"],
                      preferred_element_type=jnp.float32)
              + params["b3"])[:, :NUM_CLASSES]
    return jax.nn.log_softmax(logits, axis=-1)


def _check(z, params):
    out = jax.block_until_ready(classifier_forward(z, params))
    B = z.shape[0]
    assert out.shape == (B, NUM_CLASSES)
    row_sums = jnp.sum(jnp.exp(out), axis=1)
    assert bool(jnp.all(jnp.abs(row_sums - 1.0) < 1e-3))
    ref = _reference(z, params)
    assert bool(jnp.all(jnp.abs(out - ref) < 2e-2))
    return out


if __name__ == "__main__":
    key = jax.random.PRNGKey(0)
    k_x, k_x2, k_p = jax.random.split(key, 3)

    latent_dim = 128
    params = init_params(k_p, latent_dim=latent_dim)

    # small batch (single grid step)
    z_small = jax.random.normal(k_x, (8, latent_dim), dtype=jnp.float32)
    _check(z_small, params)

    # ragged batch (exercises >=2 grid steps + in-wrapper batch padding)
    z_ragged = jax.random.normal(k_x2, (37, latent_dim), dtype=jnp.float32)
    _check(z_ragged, params)

    print("KERNEL_OK")
</pallas_src>

<mosaic_0001>
module attributes {stable_mosaic.version = 11 : i64} {
  func.func @classifier_kernel(%arg0: i32, %arg1: memref<8x128xf32, #tpu.memory_space<vmem>>, %arg2: memref<128x256xbf16, #tpu.memory_space<vmem>>, %arg3: memref<1x256xf32, #tpu.memory_space<vmem>>, %arg4: memref<256x128xbf16, #tpu.memory_space<vmem>>, %arg5: memref<1x128xf32, #tpu.memory_space<vmem>>, %arg6: memref<128x128xbf16, #tpu.memory_space<vmem>>, %arg7: memref<1x128xf32, #tpu.memory_space<vmem>>, %arg8: memref<8x10xf32, #tpu.memory_space<vmem>>) attributes {dimension_semantics = [#tpu.dimension_semantics<parallel>], iteration_bounds = array<i64: 1>, scalar_prefetch = 0 : i64, scratch_operands = 0 : i64, tpu.core_type = #tpu.core_type<tc>, window_params = [{transform_indices = @transform_0, window_bounds = array<i64: 8, 128>}, {pipeline_mode = #tpu.pipeline_mode<synchronous>, transform_indices = @transform_1, window_bounds = array<i64: 128, 256>}, {pipeline_mode = #tpu.pipeline_mode<synchronous>, transform_indices = @transform_2, window_bounds = array<i64: 1, 256>}, {pipeline_mode = #tpu.pipeline_mode<synchronous>, transform_indices = @transform_3, window_bounds = array<i64: 256, 128>}, {pipeline_mode = #tpu.pipeline_mode<synchronous>, transform_indices = @transform_4, window_bounds = array<i64: 1, 128>}, {pipeline_mode = #tpu.pipeline_mode<synchronous>, transform_indices = @transform_5, window_bounds = array<i64: 128, 128>}, {pipeline_mode = #tpu.pipeline_mode<synchronous>, transform_indices = @transform_6, window_bounds = array<i64: 1, 128>}, {transform_indices = @transform_7, window_bounds = array<i64: 8, 10>}]} {
    %c0 = arith.constant 0 : index
    %c0_0 = arith.constant 0 : index
    %0 = vector.load %arg1[%c0, %c0_0] : memref<8x128xf32, #tpu.memory_space<vmem>>, vector<8x128xf32>
    %1 = arith.truncf %0 : vector<8x128xf32> to vector<8x128xbf16>
    %c0_1 = arith.constant 0 : index
    %c0_2 = arith.constant 0 : index
    %2 = vector.load %arg2[%c0_1, %c0_2] : memref<128x256xbf16, #tpu.memory_space<vmem>>, vector<128x256xbf16>
    %cst = arith.constant dense<0.000000e+00> : vector<8x256xf32>
    %3 = tpu.matmul %1, %2, %cst {dimension_numbers = #tpu.dot_dimension_numbers<[1], [0], [0], [1], [0, 0, 1, 1], [], []>} : vector<8x128xbf16>, vector<128x256xbf16>, vector<8x256xf32> -> vector<8x256xf32>
    %c0_3 = arith.constant 0 : index
    %c0_4 = arith.constant 0 : index
    %4 = vector.load %arg3[%c0_3, %c0_4] : memref<1x256xf32, #tpu.memory_space<vmem>>, vector<1x256xf32>
    %5 = vector.broadcast %4 : vector<1x256xf32> to vector<8x256xf32>
    %6 = arith.addf %3, %5 : vector<8x256xf32>
    %cst_5 = arith.constant 0.000000e+00 : f32
    %7 = vector.broadcast %cst_5 : f32 to vector<8x256xf32>
    %8 = arith.maximumf %6, %7 : vector<8x256xf32>
    %9 = arith.truncf %8 : vector<8x256xf32> to vector<8x256xbf16>
    %c0_6 = arith.constant 0 : index
    %c0_7 = arith.constant 0 : index
    %10 = vector.load %arg4[%c0_6, %c0_7] : memref<256x128xbf16, #tpu.memory_space<vmem>>, vector<256x128xbf16>
    %cst_8 = arith.constant dense<0.000000e+00> : vector<8x128xf32>
    %11 = tpu.matmul %9, %10, %cst_8 {dimension_numbers = #tpu.dot_dimension_numbers<[1], [0], [0], [1], [0, 0, 1, 1], [], []>} : vector<8x256xbf16>, vector<256x128xbf16>, vector<8x128xf32> -> vector<8x128xf32>
    %c0_9 = arith.constant 0 : index
    %c0_10 = arith.constant 0 : index
    %12 = vector.load %arg5[%c0_9, %c0_10] : memref<1x128xf32, #tpu.memory_space<vmem>>, vector<1x128xf32>
    %13 = vector.broadcast %12 : vector<1x128xf32> to vector<8x128xf32>
    %14 = arith.addf %11, %13 : vector<8x128xf32>
    %cst_11 = arith.constant 0.000000e+00 : f32
    %15 = vector.broadcast %cst_11 : f32 to vector<8x128xf32>
    %16 = arith.maximumf %14, %15 : vector<8x128xf32>
    %17 = arith.truncf %16 : vector<8x128xf32> to vector<8x128xbf16>
    %c0_12 = arith.constant 0 : index
    %c0_13 = arith.constant 0 : index
    %18 = vector.load %arg6[%c0_12, %c0_13] : memref<128x128xbf16, #tpu.memory_space<vmem>>, vector<128x128xbf16>
    %cst_14 = arith.constant dense<0.000000e+00> : vector<8x128xf32>
    %19 = tpu.matmul %17, %18, %cst_14 {dimension_numbers = #tpu.dot_dimension_numbers<[1], [0], [0], [1], [0, 0, 1, 1], [], []>} : vector<8x128xbf16>, vector<128x128xbf16>, vector<8x128xf32> -> vector<8x128xf32>
    %c0_15 = arith.constant 0 : index
    %c0_16 = arith.constant 0 : index
    %20 = vector.load %arg7[%c0_15, %c0_16] : memref<1x128xf32, #tpu.memory_space<vmem>>, vector<1x128xf32>
    %21 = vector.broadcast %20 : vector<1x128xf32> to vector<8x128xf32>
    %22 = arith.addf %19, %21 : vector<8x128xf32>
    %cst_17 = arith.constant dense<0xFF800000> : vector<8xf32>
    %23 = vector.multi_reduction <maximumf>, %22, %cst_17 [1] : vector<8x128xf32> to vector<8xf32>
    %24 = vector.shape_cast %23 : vector<8xf32> to vector<8x1xf32>
    %25 = vector.broadcast %24 : vector<8x1xf32> to vector<8x128xf32>
    %26 = arith.subf %22, %25 : vector<8x128xf32>
    %27 = math.exp %26 : vector<8x128xf32>
    %cst_18 = arith.constant dense<0.000000e+00> : vector<8xf32>
    %28 = vector.multi_reduction <add>, %27, %cst_18 [1] : vector<8x128xf32> to vector<8xf32>
    %29 = vector.shape_cast %28 : vector<8xf32> to vector<8x1xf32>
    %30 = math.log %29 : vector<8x1xf32>
    %31 = vector.broadcast %30 : vector<8x1xf32> to vector<8x128xf32>
    %32 = arith.subf %26, %31 : vector<8x128xf32>
    %33 = vector.extract_strided_slice %32 {offsets = [0, 0], sizes = [8, 10], strides = [1, 1]} : vector<8x128xf32> to vector<8x10xf32>
    %c0_19 = arith.constant 0 : index
    %c0_20 = arith.constant 0 : index
    %34 = vector.load %arg8[%c0_19, %c0_20] : memref<8x10xf32, #tpu.memory_space<vmem>>, vector<8x10xf32>
    tpu.vector_store %arg8[%c0_19, %c0_20], %33 {strides = array<i32>} : memref<8x10xf32, #tpu.memory_space<vmem>>, vector<8x10xf32>,
    return
  }
  func.func @transform_0(%arg0: i32) -> (i32, i32) {
    %c0_i32 = arith.constant 0 : i32
    %c0_i32_0 = arith.constant 0 : i32
    return %arg0, %c0_i32 : i32, i32
  }
  func.func @transform_1(%arg0: i32) -> (i32, i32) {
    %c0_i32 = arith.constant 0 : i32
    %c0_i32_0 = arith.constant 0 : i32
    %c0_i32_1 = arith.constant 0 : i32
    return %c0_i32, %c0_i32_0 : i32, i32
  }
  func.func @transform_2(%arg0: i32) -> (i32, i32) {
    %c0_i32 = arith.constant 0 : i32
    %c0_i32_0 = arith.constant 0 : i32
    %c0_i32_1 = arith.constant 0 : i32
    return %c0_i32, %c0_i32_0 : i32, i32
  }
  func.func @transform_3(%arg0: i32) -> (i32, i32) {
    %c0_i32 = arith.constant 0 : i32
    %c0_i32_0 = arith.constant 0 : i32
    %c0_i32_1 = arith.constant 0 : i32
    return %c0_i32, %c0_i32_0 : i32, i32
  }
  func.func @transform_4(%arg0: i32) -> (i32, i32) {
    %c0_i32 = arith.constant 0 : i32
    %c0_i32_0 = arith.constant 0 : i32
    %c0_i32_1 = arith.constant 0 : i32
    return %c0_i32, %c0_i32_0 : i32, i32
  }
  func.func @transform_5(%arg0: i32) -> (i32, i32) {
    %c0_i32 = arith.constant 0 : i32
    %c0_i32_0 = arith.constant 0 : i32
    %c0_i32_1 = arith.constant 0 : i32
    return %c0_i32, %c0_i32_0 : i32, i32
  }
  func.func @transform_6(%arg0: i32) -> (i32, i32) {
    %c0_i32 = arith.constant 0 : i32
    %c0_i32_0 = arith.constant 0 : i32
    %c0_i32_1 = arith.constant 0 : i32
    return %c0_i32, %c0_i32_0 : i32, i32
  }
  func.func @transform_7(%arg0: i32) -> (i32, i32) {
    %c0_i32 = arith.constant 0 : i32
    %c0_i32_0 = arith.constant 0 : i32
    return %arg0, %c0_i32 : i32, i32
  }
}

</mosaic_0001>

<llo_original>
// kernel: tpu_custom_call.1
$region0: #{tpu_custom_call.1}
  #allocation0 [shape = 'u32[]', space=smem, size = 0x4, offset = 0x4, fixed_abs, tag = 'smem constant byte address 0x4 - core index']
  #allocation1 [shape = 'u32[144,128]{1,0:T(1,128)}', space=vmem, size = 0x12000, scoped, tag = 'internal scratch']
  %s0 = inlined_call_operand.hbm [shape: f32[8,128], index: 0, kind: input, shape index: {}]
  %s1 = inlined_call_operand.hbm [shape: bf16[128,256], index: 1, kind: input, shape index: {}]
  %s2 = inlined_call_operand.vmem [shape: f32[1,256], index: 2, kind: input, shape index: {}]
  %s3 = inlined_call_operand.hbm [shape: bf16[256,128], index: 3, kind: input, shape index: {}]
  %s4 = inlined_call_operand.vmem [shape: f32[1,128], index: 4, kind: input, shape index: {}]
  %s5 = inlined_call_operand.hbm [shape: bf16[128,128], index: 5, kind: input, shape index: {}]
  %s6 = inlined_call_operand.vmem [shape: f32[1,128], index: 6, kind: input, shape index: {}]
  %s7 = inlined_call_operand.hbm [shape: f32[8,10], index: 7, kind: output, shape index: {}]
  %s8 = sld [smem:[#allocation0]]
  $region54: #{tpu_custom_call.1} parent=0
    _
  %s10 = ssub.s32 1, %s8
  %s11 = scalar_select 0, %s10, %s8
  $region1: #{tpu_custom_call.1} parent=0
    #allocation2 [shape = 'u8[4096]{0}', space=vmem, size = 0x1000, scoped, tag = 'input window, operand 0, single buffered']
    #allocation3 [shape = 's32[1]{0}', space=sflag, size = 0x4, scoped, tag = 'scoped memory for tpu_custom_call.1']
    #allocation4 [shape = 's32[1]{0}', space=sflag, size = 0x4, scoped, tag = 'scoped memory for tpu_custom_call.1']
    #allocation5 [shape = 'u8[65536]{0}', space=vmem, size = 0x10000, scoped, tag = 'input window, operand 1, single buffered']
    #allocation6 [shape = 's32[1]{0}', space=sflag, size = 0x4, scoped, tag = 'scoped memory for tpu_custom_call.1']
    #allocation7 [shape = 'u8[65536]{0}', space=vmem, size = 0x10000, scoped, tag = 'input window, operand 3, single buffered']
    #allocation8 [shape = 'u8[32768]{0}', space=vmem, size = 0x8000, scoped, tag = 'input window, operand 5, single buffered']
    #allocation9 [shape = 's32[1]{0}', space=sflag, size = 0x4, scoped, tag = 'scoped memory for tpu_custom_call.1']
    #allocation10 [shape = 'u8[4096]{0}', space=vmem, size = 0x1000, scoped, tag = 'output window, operand 0, single buffered']
    %12 = vsyncpa [#allocation3], 0
    %13 = vsyncpa [#allocation6], 0
    %14 = vsyncpa [#allocation9], 0
    %15 = vsyncpa [#allocation4], 0
    // Predicated region
    $region2: #{tpu_custom_call.1} parent=1 // pred_check
      _
    $region3: #{tpu_custom_call.1} parent=1 // pred_check_branch
      %17 = sbr.rel (0) target = $region5
    $region4: #{tpu_custom_call.1} parent=1 // pred_region
      %s19 = ssub.s32 128, 128
      %20 = vsyncadd [#allocation3], %s19
      %s22 = sshll.u32 [#allocation2], 4
      %s23 = int_to_ptr.vmem [resolvable:$true] %s22
      %25 = dma.hbm_to_vmem [thread:$0]  %s0, 128, %s23, [#allocation3]
    $region5: #{tpu_custom_call.1} parent=1 // pred_fallthru
      _
    // Predicated region
    $region6: #{tpu_custom_call.1} parent=1 // pred_check
      _
    $region7: #{tpu_custom_call.1} parent=1 // pred_check_branch
      %27 = sbr.rel (0) target = $region9
    $region8: #{tpu_custom_call.1} parent=1 // pred_region
      %s29 = ssub.s32 2048, 2048
      %30 = vsyncadd [#allocation6], %s29
      %s31 = sshll.u32 [#allocation5], 4
      %s32 = int_to_ptr.vmem [resolvable:$true] %s31
      %37 = dma.hbm_to_vmem [thread:$0]  %s1, 2048, %s32, [#allocation6], 128, 128, 8
    $region9: #{tpu_custom_call.1} parent=1 // pred_fallthru
      _
    // Predicated region
    $region10: #{tpu_custom_call.1} parent=1 // pred_check
      _
    $region11: #{tpu_custom_call.1} parent=1 // pred_check_branch
      %39 = sbr.rel (0) target = $region13
    $region12: #{tpu_custom_call.1} parent=1 // pred_region
      _
    $region13: #{tpu_custom_call.1} parent=1 // pred_fallthru
      _
    // Predicated region
    $region14: #{tpu_custom_call.1} parent=1 // pred_check
      _
    $region15: #{tpu_custom_call.1} parent=1 // pred_check_branch
      %41 = sbr.rel (0) target = $region17
    $region16: #{tpu_custom_call.1} parent=1 // pred_region
      %s43 = ssub.s32 2048, 2048
      %44 = vsyncadd [#allocation6], %s43
      %s45 = sshll.u32 [#allocation7], 4
      %s46 = int_to_ptr.vmem [resolvable:$true] %s45
      %51 = dma.hbm_to_vmem [thread:$0]  %s3, 2048, %s46, [#allocation6], 64, 64, 4
    $region17: #{tpu_custom_call.1} parent=1 // pred_fallthru
      _
    // Predicated region
    $region18: #{tpu_custom_call.1} parent=1 // pred_check
      _
    $region19: #{tpu_custom_call.1} parent=1 // pred_check_branch
      %53 = sbr.rel (0) target = $region21
    $region20: #{tpu_custom_call.1} parent=1 // pred_region
      _
    $region21: #{tpu_custom_call.1} parent=1 // pred_fallthru
      _
    // Predicated region
    $region22: #{tpu_custom_call.1} parent=1 // pred_check
      _
    $region23: #{tpu_custom_call.1} parent=1 // pred_check_branch
      %55 = sbr.rel (0) target = $region25
    $region24: #{tpu_custom_call.1} parent=1 // pred_region
      %s57 = ssub.s32 1024, 1024
      %58 = vsyncadd [#allocation9], %s57
      %s59 = sshll.u32 [#allocation8], 4
      %s60 = int_to_ptr.vmem [resolvable:$true] %s59
      %65 = dma.hbm_to_vmem [thread:$0]  %s5, 1024, %s60, [#allocation9], 64, 64, 4
    $region25: #{tpu_custom_call.1} parent=1 // pred_fallthru
      _
    // Predicated region
    $region26: #{tpu_custom_call.1} parent=1 // pred_check
      _
    $region27: #{tpu_custom_call.1} parent=1 // pred_check_branch
      %67 = sbr.rel (0) target = $region29
    $region28: #{tpu_custom_call.1} parent=1 // pred_region
      _
    $region29: #{tpu_custom_call.1} parent=1 // pred_fallthru
      _
    // Predicated region
    $region30: #{tpu_custom_call.1} parent=1 // pred_check
      _
    $region31: #{tpu_custom_call.1} parent=1 // pred_check_branch
      %69 = sbr.rel (0) target = $region33
    $region32: #{tpu_custom_call.1} parent=1 // pred_region
      %70 = dma.done [#allocation3], 128
    $region33: #{tpu_custom_call.1} parent=1 // pred_fallthru
      _
    // Predicated region
    $region34: #{tpu_custom_call.1} parent=1 // pred_check
      _
    $region35: #{tpu_custom_call.1} parent=1 // pred_check_branch
      %72 = sbr.rel (0) target = $region37
    $region36: #{tpu_custom_call.1} parent=1 // pred_region
      %73 = dma.done [#allocation6], 2048
    $region37: #{tpu_custom_call.1} parent=1 // pred_fallthru
      _
    // Predicated region
    $region38: #{tpu_custom_call.1} parent=1 // pred_check
      _
    $region39: #{tpu_custom_call.1} parent=1 // pred_check_branch
      %75 = sbr.rel (0) target = $region41
    $region40: #{tpu_custom_call.1} parent=1 // pred_region
      %76 = dma.done [#allocation6], 2048
    $region41: #{tpu_custom_call.1} parent=1 // pred_fallthru
      _
    // Predicated region
    $region42: #{tpu_custom_call.1} parent=1 // pred_check
      _
    $region43: #{tpu_custom_call.1} parent=1 // pred_check_branch
      %78 = sbr.rel (0) target = $region45
    $region44: #{tpu_custom_call.1} parent=1 // pred_region
      %79 = dma.done [#allocation9], 1024
    $region45: #{tpu_custom_call.1} parent=1 // pred_fallthru
      _
    %v81 = vld [vmem:[#allocation2] sm:$0xff]
    %v82 = vpack.c.bf16 %v81, %v81
    %v83 = vld [vmem:[#allocation5] sm:$0xff]
    %v84 = vld [vmem:[#allocation5 + $0x8] sm:$0xff]
    %v85 = vld [vmem:[#allocation5 + $0x10] sm:$0xff]
    %v86 = vld [vmem:[#allocation5 + $0x18] sm:$0xff]
    %v87 = vld [vmem:[#allocation5 + $0x20] sm:$0xff]
    %v88 = vld [vmem:[#allocation5 + $0x28] sm:$0xff]
    %v89 = vld [vmem:[#allocation5 + $0x30] sm:$0xff]
    %v90 = vld [vmem:[#allocation5 + $0x38] sm:$0xff]
    %v91 = vld [vmem:[#allocation5 + $0x40] sm:$0xff]
    %v92 = vld [vmem:[#allocation5 + $0x48] sm:$0xff]
    %v93 = vld [vmem:[#allocation5 + $0x50] sm:$0xff]
    %v94 = vld [vmem:[#allocation5 + $0x58] sm:$0xff]
    %v95 = vld [vmem:[#allocation5 + $0x60] sm:$0xff]
    %v96 = vld [vmem:[#allocation5 + $0x68] sm:$0xff]
    %v97 = vld [vmem:[#allocation5 + $0x70] sm:$0xff]
    %v98 = vld [vmem:[#allocation5 + $0x78] sm:$0xff]
    %v99 = vld [vmem:[%s2] sm:$0x3]
    %v101 = vlaneseq
    %v102 = vshrl.u32 %v101, 7
    %v103 = vsub.s32 0, %v102
    %v104 = vrot.slane %v99, %v103
    %v105 = vlaneseq
    %v106 = vshrl.u32 %v105, 7
    %v107 = vsub.s32 1, %v106
    %v108 = vrot.slane %v99, %v107
    %v127 = vunpack.c.l.b16 %v83
    %v128 = vunpack.c.h.b16 %v83
    %v129 = vunpack.c.l.b16 %v84
    %v130 = vunpack.c.h.b16 %v84
    %v131 = vunpack.c.l.b16 %v85
    %v132 = vunpack.c.h.b16 %v85
    %v133 = vunpack.c.l.b16 %v86
    %v134 = vunpack.c.h.b16 %v86
    %v135 = vunpack.c.l.b16 %v87
    %v136 = vunpack.c.h.b16 %v87
    %v137 = vunpack.c.l.b16 %v88
    %v138 = vunpack.c.h.b16 %v88
    %v139 = vunpack.c.l.b16 %v89
    %v140 = vunpack.c.h.b16 %v89
    %v141 = vunpack.c.l.b16 %v90
    %v142 = vunpack.c.h.b16 %v90
    %v143 = vunpack.c.l.b16 %v91
    %v144 = vunpack.c.h.b16 %v91
    %v145 = vunpack.c.l.b16 %v92
    %v146 = vunpack.c.h.b16 %v92
    %v147 = vunpack.c.l.b16 %v93
    %v148 = vunpack.c.h.b16 %v93
    %v149 = vunpack.c.l.b16 %v94
    %v150 = vunpack.c.h.b16 %v94
    %v151 = vunpack.c.l.b16 %v95
    %v152 = vunpack.c.h.b16 %v95
    %v153 = vunpack.c.l.b16 %v96
    %v154 = vunpack.c.h.b16 %v96
    %v155 = vunpack.c.l.b16 %v97
    %v156 = vunpack.c.h.b16 %v97
    %v157 = vunpack.c.l.b16 %v98
    %v158 = vunpack.c.h.b16 %v98
    %v159 = vpack.c.b16 %v129, %v127
    %v160 = vpack.c.b16 %v130, %v128
    %v161 = vpack.c.b16 %v133, %v131
    %v162 = vpack.c.b16 %v134, %v132
    %v163 = vpack.c.b16 %v137, %v135
    %v164 = vpack.c.b16 %v138, %v136
    %v165 = vpack.c.b16 %v141, %v139
    %v166 = vpack.c.b16 %v142, %v140
    %v167 = vpack.c.b16 %v145, %v143
    %v168 = vpack.c.b16 %v146, %v144
    %v169 = vpack.c.b16 %v149, %v147
    %v170 = vpack.c.b16 %v150, %v148
    %v171 = vpack.c.b16 %v153, %v151
    %v172 = vpack.c.b16 %v154, %v152
    %v173 = vpack.c.b16 %v157, %v155
    %v174 = vpack.c.b16 %v158, %v156
    %191 = vmatprep.subr.bf16.mxu0 %v160
    %192 = vmatpush1.bf16.msra.mxu0 %v159
    %193 = vmatprep.subr.bf16.mxu0 %v162
    %194 = vmatpush1.bf16.msra.mxu0 %v161
    %195 = vmatprep.subr.bf16.mxu0 %v164
    %196 = vmatpush1.bf16.msra.mxu0 %v163
    %197 = vmatprep.subr.bf16.mxu0 %v166
    %198 = vmatpush1.bf16.msra.mxu0 %v165
    %199 = vmatprep.subr.bf16.mxu0 %v168
    %200 = vmatpush1.bf16.msra.mxu0 %v167
    %201 = vmatprep.subr.bf16.mxu0 %v170
    %202 = vmatpush1.bf16.msra.mxu0 %v169
    %203 = vmatprep.subr.bf16.mxu0 %v172
    %204 = vmatpush1.bf16.msra.mxu0 %v171
    %205 = vmatprep.subr.bf16.mxu0 %v174
    %206 = vmatpush1.bf16.msra.mxu0 %v173
    %207 = vmatprep.subr.bf16.mxu0 0
    %208 = vmatpush1.bf16.msra.mxu0 0
    %209 = vmatprep.subr.bf16.mxu0 0
    %210 = vmatpush1.bf16.msra.mxu0 0
    %211 = vmatprep.subr.bf16.mxu0 0
    %212 = vmatpush1.bf16.msra.mxu0 0
    %213 = vmatprep.subr.bf16.mxu0 0
    %214 = vmatpush1.bf16.msra.mxu0 0
    %215 = vmatprep.subr.bf16.mxu0 0
    %216 = vmatpush1.bf16.msra.mxu0 0
    %217 = vmatprep.subr.bf16.mxu0 0
    %218 = vmatpush1.bf16.msra.mxu0 0
    %219 = vmatprep.subr.bf16.mxu0 0
    %220 = vmatpush1.bf16.msra.mxu0 0
    %221 = vmatprep.subr.bf16.mxu0 0
    %222 = vmatpush1.bf16.msra.mxu0 0
    %223 = vmatprep.mubr.bf16.mxu0 0
    %224 = vmatmul.mubr.bf16.gmra.mrb[0].mxu0 %v82
    %v225 = vpop.f32.mrb[0].mxu0
    %v226 = vadd.f32 %v104, %v225
    %v227 = vpop.f32.mrb[0].mxu0
    %v228 = vadd.f32 %v108, %v227
    %v229 = vpop.f32.mrb[0].mxu0
    %v230 = vpop.f32.mrb[0].mxu0
    %231 = vdwg.mxu0
    %v232 = vmax.f32 %v226, 0.0
    %v233 = vmax.f32 %v228, 0.0
    %v234 = vpack.c.bf16 %v232, %v232
    %v235 = vpack.c.bf16 %v233, %v233
    %v236 = vld [vmem:[#allocation7] sm:$0xf]
    %v237 = vld [vmem:[#allocation7 + $0x4] sm:$0xf]
    %v238 = vld [vmem:[#allocation7 + $0x8] sm:$0xf]
    %v239 = vld [vmem:[#allocation7 + $0xc] sm:$0xf]
    %v240 = vld [vmem:[#allocation7 + $0x10] sm:$0xf]
    %v241 = vld [vmem:[#allocation7 + $0x14] sm:$0xf]
    %v242 = vld [vmem:[#allocation7 + $0x18] sm:$0xf]
    %v243 = vld [vmem:[#allocation7 + $0x1c] sm:$0xf]
    %v244 = vld [vmem:[#allocation7 + $0x20] sm:$0xf]
    %v245 = vld [vmem:[#allocation7 + $0x24] sm:$0xf]
    %v246 = vld [vmem:[#allocation7 + $0x28] sm:$0xf]
    %v247 = vld [vmem:[#allocation7 + $0x2c] sm:$0xf]
    %v248 = vld [vmem:[#allocation7 + $0x30] sm:$0xf]
    %v249 = vld [vmem:[#allocation7 + $0x34] sm:$0xf]
    %v250 = vld [vmem:[#allocation7 + $0x38] sm:$0xf]
    %v251 = vld [vmem:[#allocation7 + $0x3c] sm:$0xf]
    %v252 = vld [vmem:[#allocation7 + $0x40] sm:$0xf]
    %v253 = vld [vmem:[#allocation7 + $0x44] sm:$0xf]
    %v254 = vld [vmem:[#allocation7 + $0x48] sm:$0xf]
    %v255 = vld [vmem:[#allocation7 + $0x4c] sm:$0xf]
    %v256 = vld [vmem:[#allocation7 + $0x50] sm:$0xf]
    %v257 = vld [vmem:[#allocation7 + $0x54] sm:$0xf]
    %v258 = vld [vmem:[#allocation7 + $0x58] sm:$0xf]
    %v259 = vld [vmem:[#allocation7 + $0x5c] sm:$0xf]
    %v260 = vld [vmem:[#allocation7 + $0x60] sm:$0xf]
    %v261 = vld [vmem:[#allocation7 + $0x64] sm:$0xf]
    %v262 = vld [vmem:[#allocation7 + $0x68] sm:$0xf]
    %v263 = vld [vmem:[#allocation7 + $0x6c] sm:$0xf]
    %v264 = vld [vmem:[#allocation7 + $0x70] sm:$0xf]
    %v265 = vld [vmem:[#allocation7 + $0x74] sm:$0xf]
    %v266 = vld [vmem:[#allocation7 + $0x78] sm:$0xf]
    %v267 = vld [vmem:[#allocation7 + $0x7c] sm:$0xf]
    %v268 = vld [vmem:[%s4] sm:$0x1]
    %v270 = vlaneseq
    %v271 = vshrl.u32 %v270, 7
    %v272 = vsub.s32 0, %v271
    %v273 = vrot.slane %v268, %v272
    %v307 = vunpack.c.l.b16 %v236
    %v308 = vunpack.c.l.b16 %v237
    %v309 = vunpack.c.l.b16 %v238
    %v310 = vunpack.c.l.b16 %v239
    %v311 = vunpack.c.l.b16 %v240
    %v312 = vunpack.c.l.b16 %v241
    %v313 = vunpack.c.l.b16 %v242
    %v314 = vunpack.c.l.b16 %v243
    %v315 = vunpack.c.l.b16 %v244
    %v316 = vunpack.c.l.b16 %v245
    %v317 = vunpack.c.l.b16 %v246
    %v318 = vunpack.c.l.b16 %v247
    %v319 = vunpack.c.l.b16 %v248
    %v320 = vunpack.c.l.b16 %v249
    %v321 = vunpack.c.l.b16 %v250
    %v322 = vunpack.c.l.b16 %v251
    %v323 = vunpack.c.l.b16 %v252
    %v324 = vunpack.c.l.b16 %v253
    %v325 = vunpack.c.l.b16 %v254
    %v326 = vunpack.c.l.b16 %v255
    %v327 = vunpack.c.l.b16 %v256
    %v328 = vunpack.c.l.b16 %v257
    %v329 = vunpack.c.l.b16 %v258
    %v330 = vunpack.c.l.b16 %v259
    %v331 = vunpack.c.l.b16 %v260
    %v332 = vunpack.c.l.b16 %v261
    %v333 = vunpack.c.l.b16 %v262
    %v334 = vunpack.c.l.b16 %v263
    %v335 = vunpack.c.l.b16 %v264
    %v336 = vunpack.c.l.b16 %v265
    %v337 = vunpack.c.l.b16 %v266
    %v338 = vunpack.c.l.b16 %v267
    %v339 = vpack.c.b16 %v308, %v307
    %v340 = vpack.c.b16 %v310, %v309
    %v341 = vpack.c.b16 %v312, %v311
    %v342 = vpack.c.b16 %v314, %v313
    %v343 = vpack.c.b16 %v316, %v315
    %v344 = vpack.c.b16 %v318, %v317
    %v345 = vpack.c.b16 %v320, %v319
    %v346 = vpack.c.b16 %v322, %v321
    %v347 = vpack.c.b16 %v324, %v323
    %v348 = vpack.c.b16 %v326, %v325
    %v349 = vpack.c.b16 %v328, %v327
    %v350 = vpack.c.b16 %v330, %v329
    %v351 = vpack.c.b16 %v332, %v331
    %v352 = vpack.c.b16 %v334, %v333
    %v353 = vpack.c.b16 %v336, %v335
    %v354 = vpack.c.b16 %v338, %v337
    %371 = vmatprep.subr.bf16.mxu0 0
    %372 = vmatpush1.bf16.msra.mxu0 %v339
    %373 = vmatprep.subr.bf16.mxu0 0
    %374 = vmatpush1.bf16.msra.mxu0 %v340
    %375 = vmatprep.subr.bf16.mxu0 0
    %376 = vmatpush1.bf16.msra.mxu0 %v341
    %377 = vmatprep.subr.bf16.mxu0 0
    %378 = vmatpush1.bf16.msra.mxu0 %v342
    %379 = vmatprep.subr.bf16.mxu0 0
    %380 = vmatpush1.bf16.msra.mxu0 %v343
    %381 = vmatprep.subr.bf16.mxu0 0
    %382 = vmatpush1.bf16.msra.mxu0 %v344
    %383 = vmatprep.subr.bf16.mxu0 0
    %384 = vmatpush1.bf16.msra.mxu0 %v345
    %385 = vmatprep.subr.bf16.mxu0 0
    %386 = vmatpush1.bf16.msra.mxu0 %v346
    %387 = vmatprep.subr.bf16.mxu0 0
    %388 = vmatpush1.bf16.msra.mxu0 %v347
    %389 = vmatprep.subr.bf16.mxu0 0
    %390 = vmatpush1.bf16.msra.mxu0 %v348
    %391 = vmatprep.subr.bf16.mxu0 0
    %392 = vmatpush1.bf16.msra.mxu0 %v349
    %393 = vmatprep.subr.bf16.mxu0 0
    %394 = vmatpush1.bf16.msra.mxu0 %v350
    %395 = vmatprep.subr.bf16.mxu0 0
    %396 = vmatpush1.bf16.msra.mxu0 %v351
    %397 = vmatprep.subr.bf16.mxu0 0
    %398 = vmatpush1.bf16.msra.mxu0 %v352
    %399 = vmatprep.subr.bf16.mxu0 0
    %400 = vmatpush1.bf16.msra.mxu0 %v353
    %401 = vmatprep.subr.bf16.mxu0 0
    %402 = vmatpush1.bf16.msra.mxu0 %v354
    %403 = vmatprep.mubr.bf16.mxu0 %v235
    %404 = vmatmul.mubr.bf16.gmra.mrb[0].mxu0 %v234
    %v405 = vpop.f32.mrb[0].mxu0
    %v406 = vadd.f32 %v273, %v405
    %v407 = vpop.f32.mrb[0].mxu0
    %v408 = vpop.f32.mrb[0].mxu0
    %v409 = vpop.f32.mrb[0].mxu0
    %410 = vdwg.mxu0
    %v411 = vmax.f32 %v406, 0.0
    %v412 = vpack.c.bf16 %v411, %v411
    %v413 = vld [vmem:[#allocation8] sm:$0xf]
    %v414 = vld [vmem:[#allocation8 + $0x4] sm:$0xf]
    %v415 = vld [vmem:[#allocation8 + $0x8] sm:$0xf]
    %v416 = vld [vmem:[#allocation8 + $0xc] sm:$0xf]
    %v417 = vld [vmem:[#allocation8 + $0x10] sm:$0xf]
    %v418 = vld [vmem:[#allocation8 + $0x14] sm:$0xf]
    %v419 = vld [vmem:[#allocation8 + $0x18] sm:$0xf]
    %v420 = vld [vmem:[#allocation8 + $0x1c] sm:$0xf]
    %v421 = vld [vmem:[#allocation8 + $0x20] sm:$0xf]
    %v422 = vld [vmem:[#allocation8 + $0x24] sm:$0xf]
    %v423 = vld [vmem:[#allocation8 + $0x28] sm:$0xf]
    %v424 = vld [vmem:[#allocation8 + $0x2c] sm:$0xf]
    %v425 = vld [vmem:[#allocation8 + $0x30] sm:$0xf]
    %v426 = vld [vmem:[#allocation8 + $0x34] sm:$0xf]
    %v427 = vld [vmem:[#allocation8 + $0x38] sm:$0xf]
    %v428 = vld [vmem:[#allocation8 + $0x3c] sm:$0xf]
    %v429 = vld [vmem:[%s6] sm:$0x1]
    %v431 = vlaneseq
    %v432 = vshrl.u32 %v431, 7
    %v433 = vsub.s32 0, %v432
    %v434 = vrot.slane %v429, %v433
    %v452 = vunpack.c.l.b16 %v413
    %v453 = vunpack.c.l.b16 %v414
    %v454 = vunpack.c.l.b16 %v415
    %v455 = vunpack.c.l.b16 %v416
    %v456 = vunpack.c.l.b16 %v417
    %v457 = vunpack.c.l.b16 %v418
    %v458 = vunpack.c.l.b16 %v419
    %v459 = vunpack.c.l.b16 %v420
    %v460 = vunpack.c.l.b16 %v421
    %v461 = vunpack.c.l.b16 %v422
    %v462 = vunpack.c.l.b16 %v423
    %v463 = vunpack.c.l.b16 %v424
    %v464 = vunpack.c.l.b16 %v425
    %v465 = vunpack.c.l.b16 %v426
    %v466 = vunpack.c.l.b16 %v427
    %v467 = vunpack.c.l.b16 %v428
    %v468 = vpack.c.b16 %v453, %v452
    %v469 = vpack.c.b16 %v455, %v454
    %v470 = vpack.c.b16 %v457, %v456
    %v471 = vpack.c.b16 %v459, %v458
    %v472 = vpack.c.b16 %v461, %v460
    %v473 = vpack.c.b16 %v463, %v462
    %v474 = vpack.c.b16 %v465, %v464
    %v475 = vpack.c.b16 %v467, %v466
    %484 = vmatprep.subr.bf16.mxu0 0
    %485 = vmatpush1.bf16.msra.mxu0 %v468
    %486 = vmatprep.subr.bf16.mxu0 0
    %487 = vmatpush1.bf16.msra.mxu0 %v469
    %488 = vmatprep.subr.bf16.mxu0 0
    %489 = vmatpush1.bf16.msra.mxu0 %v470
    %490 = vmatprep.subr.bf16.mxu0 0
    %491 = vmatpush1.bf16.msra.mxu0 %v471
    %492 = vmatprep.subr.bf16.mxu0 0
    %493 = vmatpush1.bf16.msra.mxu0 %v472
    %494 = vmatprep.subr.bf16.mxu0 0
    %495 = vmatpush1.bf16.msra.mxu0 %v473
    %496 = vmatprep.subr.bf16.mxu0 0
    %497 = vmatpush1.bf16.msra.mxu0 %v474
    %498 = vmatprep.subr.bf16.mxu0 0
    %499 = vmatpush1.bf16.msra.mxu0 %v475
    %500 = vmatprep.subr.bf16.mxu0 0
    %501 = vmatpush1.bf16.msra.mxu0 0
    %502 = vmatprep.subr.bf16.mxu0 0
    %503 = vmatpush1.bf16.msra.mxu0 0
    %504 = vmatprep.subr.bf16.mxu0 0
    %505 = vmatpush1.bf16.msra.mxu0 0
    %506 = vmatprep.subr.bf16.mxu0 0
    %507 = vmatpush1.bf16.msra.mxu0 0
    %508 = vmatprep.subr.bf16.mxu0 0
    %509 = vmatpush1.bf16.msra.mxu0 0
    %510 = vmatprep.subr.bf16.mxu0 0
    %511 = vmatpush1.bf16.msra.mxu0 0
    %512 = vmatprep.subr.bf16.mxu0 0
    %513 = vmatpush1.bf16.msra.mxu0 0
    %514 = vmatprep.subr.bf16.mxu0 0
    %515 = vmatpush1.bf16.msra.mxu0 0
    %516 = vmatprep.mubr.bf16.mxu0 0
    %517 = vmatmul.mubr.bf16.gmra.mrb[0].mxu0 %v412
    %v518 = vpop.f32.mrb[0].mxu0
    %v519 = vadd.f32 %v434, %v518
    %v520 = vpop.f32.mrb[0].mxu0
    %v521 = vpop.f32.mrb[0].mxu0
    %v522 = vpop.f32.mrb[0].mxu0
    %523 = vdwg.mxu0
    %524 = vmax.xlane.f32.xlu0 %v519
    %v525 = vpop.xlane.xlu0 %524
    %v526 = vsub.f32 %v519, %v525
    %v527 = vmul.f32 %v526, 1.442695
    %v528 = vpow.pop %v527
    %529 = vadd.xlane.f32.xlu0 %v528
    %v530 = vpop.xlane.xlu0 %529
    %v531 = vlog2.pop %v530
    %v532 = vmul.f32 %v531, 0.6931472
    %v533 = vsub.f32 %v526, %v532
    %vm534 = vcmask 80896
    %535 = vst.msk [vmem:[#allocation10] sm:$0xff] %vm534, %v533
    // Predicated region
    $region46: #{tpu_custom_call.1} parent=1 // pred_check
      _
    $region47: #{tpu_custom_call.1} parent=1 // pred_check_branch
      %537 = sbr.rel (0) target = $region49
    $region48: #{tpu_custom_call.1} parent=1 // pred_region
      %s539 = ssub.s32 128, 128
      %540 = vsyncadd [#allocation4], %s539
      %s542 = sshll.u32 [#allocation10], 4
      %s543 = int_to_ptr.vmem [resolvable:$true] %s542
      %545 = dma.vmem_to_hbm [thread:$0]  %s543, 128, %s7, [#allocation4]
    $region49: #{tpu_custom_call.1} parent=1 // pred_fallthru
      _
    // Predicated region
    $region50: #{tpu_custom_call.1} parent=1 // pred_check
      _
    $region51: #{tpu_custom_call.1} parent=1 // pred_check_branch
      %547 = sbr.rel (0) target = $region53
    $region52: #{tpu_custom_call.1} parent=1 // pred_region
      %548 = dma.done [#allocation4], 128
    $region53: #{tpu_custom_call.1} parent=1 // pred_fallthru
      _
    %549 = vsyncpa [#allocation3], 1
    %550 = vsyncpa [#allocation6], 1
    %551 = vsyncpa [#allocation9], 1
    %552 = vsyncpa [#allocation4], 1

</llo_original>
